<compile_context>
chip_gen: v7x
topology: tpu7x:2x2x1
jax: 0.10.0
libtpu: 0.0.40
codegen_flags: <defaults>
</compile_context>

<pallas_src>
import jax
import jax.numpy as jnp
from jax.experimental import pallas as pl
from jax.experimental.pallas import tpu as pltpu


def _cdiv(a, b):
    return -(-a // b)


def _conv1x1_kernel(x_ref, w_ref, b_ref, o_ref):
    """Per-tile 1x1 conv: Y[bn, C_out, T] = W[C_out, C_in] @ X[bn, C_in, T] + b.

    C_in / C_out are tiny (4 / 8), so the contraction is a statically unrolled
    chain of VPU broadcast multiply-adds (spatial T stays on lanes) rather than
    a degenerate MXU matmul.  The op is HBM-bandwidth-bound either way.
    """
    x = x_ref[...]              # (bn, c_in, ts)   f32
    wv = w_ref[...]             # (c_out, c_in)
    c_in = x.shape[1]           # static Python int -> static unroll below

    acc = wv[None, :, 0:1] * x[:, 0:1, :]                  # (bn, c_out, ts)
    for c in range(1, c_in):
        acc = acc + wv[None, :, c:c + 1] * x[:, c:c + 1, :]
    # Implicit (1, c_out, 1) -> (bn, c_out, ts) bias broadcast.
    o_ref[...] = (acc + b_ref[...][None, :, :]).astype(o_ref.dtype)


def _pick_tiles(n, c_in, c_out, s, *, ts_max=32768, vmem_budget=8 * 1024 * 1024):
    """Choose (batch_tile, spatial_tile, padded_spatial) for the kernel."""
    lane = 128
    s_128 = _cdiv(s, lane) * lane
    # Balanced spatial tiles: n_sp near-equal, lane-aligned tiles; pad waste
    # per tile is < 128 lanes (instead of up to a whole tile).
    n_sp = _cdiv(s_128, ts_max)
    ts = _cdiv(_cdiv(s_128, n_sp), lane) * lane
    s_pad = n_sp * ts

    # Batch tile: as many rows as fit a conservative double-buffered VMEM
    # budget (well under the 16 MiB v5e scoped default), so per-grid-step
    # traffic is MB-scale and the ~0.35us/step overhead is amortized.
    per_bn = (c_in + c_out) * ts * 4 * 2          # f32, in+out, double-buffered
    bn_cap = max(1, vmem_budget // per_bn)
    if n_sp == 1:
        # Keep >= 2 grid steps when possible so both v7x TensorCores get work.
        bn_cap = min(bn_cap, max(1, _cdiv(n, 2)))
    bn_cap = min(bn_cap, n)
    bn = 1
    for d in range(int(bn_cap), 0, -1):           # largest divisor of n <= cap
        if n % d == 0:
            bn = d
            break
    return bn, ts, s_pad


def conv1x1_pallas(x_nchw, weight, bias):
    """1x1 Conv2d on NCHW input via a Pallas kernel, with no transposes.

    Args:
      x_nchw: [N, C_in, H, W] float32
      weight: [C_out, C_in]   float32 (torch weight [C_out, C_in, 1, 1] squeezed)
      bias:   [C_out]         float32
    Returns:
      [N, C_out, H, W] float32
    """
    n, c_in, h, w = x_nchw.shape
    c_out = weight.shape[0]
    s = h * w

    # Channels-first [N, C_in, S]: spatial S is the fast/lane axis, so the NCHW
    # tensor reshapes straight into kernel layout (no transpose).
    x = x_nchw.reshape(n, c_in, s)

    bn, ts, s_pad = _pick_tiles(n, c_in, c_out, s)
    if s_pad != s:
        # Ragged spatial tail (< 128 lanes per tile of slack): zero-pad, slice
        # back off after the kernel.
        x = jnp.pad(x, ((0, 0), (0, 0), (0, s_pad - s)))

    y = pl.pallas_call(
        _conv1x1_kernel,
        out_shape=jax.ShapeDtypeStruct((n, c_out, s_pad), x.dtype),
        grid_spec=pltpu.PrefetchScalarGridSpec(
            num_scalar_prefetch=0,
            grid=(n // bn, s_pad // ts),
            in_specs=[
                # X tile: (bn, C_in, ts) — C_in equals the full dim, ts is a
                # multiple of 128 lanes.
                pl.BlockSpec((bn, c_in, ts), lambda i, j: (i, 0, j)),
                # Weight / bias: full, resident across the whole grid.
                pl.BlockSpec((c_out, c_in), lambda i, j: (0, 0)),
                pl.BlockSpec((c_out, 1), lambda i, j: (0, 0)),
            ],
            # Lane-dense output tile (last dim is a multiple of 128): full-width
            # unmasked stores.
            out_specs=pl.BlockSpec((bn, c_out, ts), lambda i, j: (i, 0, j)),
        ),
        compiler_params=pltpu.CompilerParams(
            # Both grid axes independent -> megacore sharding on v7x.
            dimension_semantics=("parallel", "parallel"),
        ),
    )(x, weight, bias.reshape(c_out, 1))

    if s_pad != s:
        y = y[:, :, :s]
    return y.reshape(n, c_out, h, w)


@jax.jit
def _apply_all(weight, bias, xs):
    """Apply the 1x1-conv kernel to every element of xs under a single jit."""
    shapes = {(x.shape, x.dtype) for x in xs}
    if len(xs) > 1 and len(shapes) == 1:
        # All list elements share a shape: fold the list into the batch axis so
        # the whole ApplyAll forward is ONE pallas_call (one kernel launch).
        n = xs[0].shape[0]
        out = conv1x1_pallas(jnp.concatenate(xs, axis=0), weight, bias)
        return tuple(out[i * n:(i + 1) * n] for i in range(len(xs)))
    # Heterogeneous shapes (e.g. multi-scale feature maps): one pallas_call per
    # element, still inside a single compiled program (no per-element dispatch,
    # no concatenation copies).
    return tuple(conv1x1_pallas(x, weight, bias) for x in xs)


class ApplyAll:
    """JAX/Pallas re-implementation of the ApplyAll module.

    Applies the underlying module (here: a 1x1 Conv2d Pallas kernel) to every
    element of the input list.
    """

    def __init__(self, weight, bias):
        self.weight = weight  # [C_out, C_in]
        self.bias = bias      # [C_out]

    def __call__(self, in_list, **kwargs):
        # TODO(synk): arbitrary Sequential module_cfg sub-modules are not
        # translated; the underlying module is fixed to a 1x1 Conv2d here.
        return list(_apply_all(self.weight, self.bias, tuple(in_list)))


if __name__ == "__main__":
    key = jax.random.PRNGKey(0)
    k0, k1, k2, k3, kw, kb = jax.random.split(key, 6)

    # Input list of three NCHW feature maps; ApplyAll processes every one.
    n, c_in, h, w = 2, 4, 16, 16
    c_out = 8

    x0 = jax.random.normal(k0, (n, c_in, h, w), dtype=jnp.float32)
    x1 = jax.random.normal(k1, (n, c_in, h, w), dtype=jnp.float32)
    x2 = jax.random.normal(k2, (n, c_in, h, w), dtype=jnp.float32)
    in_list = [x0, x1, x2]

    # Deterministic parameters for the underlying 1x1 Conv2d
    # (torch weight shape [C_out, C_in, 1, 1] -> stored here as [C_out, C_in]).
    weight = jax.random.normal(kw, (c_out, c_in), dtype=jnp.float32) * 0.1
    bias = jax.random.normal(kb, (c_out,), dtype=jnp.float32) * 0.1

    module = ApplyAll(weight, bias)

    def ref_fn(x):
        return jnp.einsum("nchw,oc->nohw", x, weight) + bias[None, :, None, None]

    # 1) Homogeneous list -> single fused pallas_call path.
    out_list = module(in_list)
    for o in out_list:
        jax.block_until_ready(o)
    for x, o in zip(in_list, out_list):
        assert o.shape == (n, c_out, h, w)
        assert jnp.allclose(o, ref_fn(x), atol=1e-5, rtol=1e-5)

    # 2) Heterogeneous list (multi-scale maps) -> per-element path, which also
    #    exercises the ragged-spatial pad/slice branch (8x8 -> 64 lanes).
    x3 = jax.random.normal(k3, (n, c_in, 8, 8), dtype=jnp.float32)
    het_list = [x0, x3]
    het_out = module(het_list)
    for o in het_out:
        jax.block_until_ready(o)
    for x, o in zip(het_list, het_out):
        assert o.shape == (n, c_out, x.shape[2], x.shape[3])
        assert jnp.allclose(o, ref_fn(x), atol=1e-5, rtol=1e-5)

    print("KERNEL_OK")
</pallas_src>

<mosaic_0001>
module attributes {stable_mosaic.version = 11 : i64} {
  func.func @_conv1x1_kernel(%arg0: i32, %arg1: i32, %arg2: memref<3x4x256xf32, #tpu.memory_space<vmem>>, %arg3: memref<8x4xf32, #tpu.memory_space<vmem>>, %arg4: memref<8x1xf32, #tpu.memory_space<vmem>>, %arg5: memref<3x8x256xf32, #tpu.memory_space<vmem>>) attributes {dimension_semantics = [#tpu.dimension_semantics<parallel>, #tpu.dimension_semantics<parallel>], iteration_bounds = array<i64: 2, 1>, scalar_prefetch = 0 : i64, scratch_operands = 0 : i64, tpu.core_type = #tpu.core_type<tc>, window_params = [{transform_indices = @transform_0, window_bounds = array<i64: 3, 4, 256>}, {pipeline_mode = #tpu.pipeline_mode<synchronous>, transform_indices = @transform_1, window_bounds = array<i64: 8, 4>}, {pipeline_mode = #tpu.pipeline_mode<synchronous>, transform_indices = @transform_2, window_bounds = array<i64: 8, 1>}, {transform_indices = @transform_3, window_bounds = array<i64: 3, 8, 256>}]} {
    %c0 = arith.constant 0 : index
    %c0_0 = arith.constant 0 : index
    %c0_1 = arith.constant 0 : index
    %0 = vector.load %arg2[%c0, %c0_0, %c0_1] : memref<3x4x256xf32, #tpu.memory_space<vmem>>, vector<3x4x256xf32>
    %c0_2 = arith.constant 0 : index
    %c0_3 = arith.constant 0 : index
    %1 = vector.load %arg3[%c0_2, %c0_3] : memref<8x4xf32, #tpu.memory_space<vmem>>, vector<8x4xf32>
    %2 = vector.extract_strided_slice %1 {offsets = [0, 0], sizes = [8, 1], strides = [1, 1]} : vector<8x4xf32> to vector<8x1xf32>
    %3 = vector.shape_cast %2 : vector<8x1xf32> to vector<1x8x1xf32>
    %4 = vector.extract_strided_slice %0 {offsets = [0, 0, 0], sizes = [3, 1, 256], strides = [1, 1, 1]} : vector<3x4x256xf32> to vector<3x1x256xf32>
    %5 = vector.broadcast %3 : vector<1x8x1xf32> to vector<3x8x256xf32>
    %6 = vector.broadcast %4 : vector<3x1x256xf32> to vector<3x8x256xf32>
    %7 = arith.mulf %5, %6 : vector<3x8x256xf32>
    %8 = vector.extract_strided_slice %1 {offsets = [0, 1], sizes = [8, 1], strides = [1, 1]} : vector<8x4xf32> to vector<8x1xf32>
    %9 = vector.shape_cast %8 : vector<8x1xf32> to vector<1x8x1xf32>
    %10 = vector.extract_strided_slice %0 {offsets = [0, 1, 0], sizes = [3, 1, 256], strides = [1, 1, 1]} : vector<3x4x256xf32> to vector<3x1x256xf32>
    %11 = vector.broadcast %9 : vector<1x8x1xf32> to vector<3x8x256xf32>
    %12 = vector.broadcast %10 : vector<3x1x256xf32> to vector<3x8x256xf32>
    %13 = arith.mulf %11, %12 : vector<3x8x256xf32>
    %14 = arith.addf %7, %13 : vector<3x8x256xf32>
    %15 = vector.extract_strided_slice %1 {offsets = [0, 2], sizes = [8, 1], strides = [1, 1]} : vector<8x4xf32> to vector<8x1xf32>
    %16 = vector.shape_cast %15 : vector<8x1xf32> to vector<1x8x1xf32>
    %17 = vector.extract_strided_slice %0 {offsets = [0, 2, 0], sizes = [3, 1, 256], strides = [1, 1, 1]} : vector<3x4x256xf32> to vector<3x1x256xf32>
    %18 = vector.broadcast %16 : vector<1x8x1xf32> to vector<3x8x256xf32>
    %19 = vector.broadcast %17 : vector<3x1x256xf32> to vector<3x8x256xf32>
    %20 = arith.mulf %18, %19 : vector<3x8x256xf32>
    %21 = arith.addf %14, %20 : vector<3x8x256xf32>
    %22 = vector.extract_strided_slice %1 {offsets = [0, 3], sizes = [8, 1], strides = [1, 1]} : vector<8x4xf32> to vector<8x1xf32>
    %23 = vector.shape_cast %22 : vector<8x1xf32> to vector<1x8x1xf32>
    %24 = vector.extract_strided_slice %0 {offsets = [0, 3, 0], sizes = [3, 1, 256], strides = [1, 1, 1]} : vector<3x4x256xf32> to vector<3x1x256xf32>
    %25 = vector.broadcast %23 : vector<1x8x1xf32> to vector<3x8x256xf32>
    %26 = vector.broadcast %24 : vector<3x1x256xf32> to vector<3x8x256xf32>
    %27 = arith.mulf %25, %26 : vector<3x8x256xf32>
    %28 = arith.addf %21, %27 : vector<3x8x256xf32>
    %c0_4 = arith.constant 0 : index
    %c0_5 = arith.constant 0 : index
    %29 = vector.load %arg4[%c0_4, %c0_5] : memref<8x1xf32, #tpu.memory_space<vmem>>, vector<8x1xf32>
    %30 = vector.shape_cast %29 : vector<8x1xf32> to vector<1x8x1xf32>
    %31 = vector.broadcast %30 : vector<1x8x1xf32> to vector<3x8x256xf32>
    %32 = arith.addf %28, %31 : vector<3x8x256xf32>
    %c0_6 = arith.constant 0 : index
    %c0_7 = arith.constant 0 : index
    %c0_8 = arith.constant 0 : index
    %33 = vector.load %arg5[%c0_6, %c0_7, %c0_8] : memref<3x8x256xf32, #tpu.memory_space<vmem>>, vector<3x8x256xf32>
    tpu.vector_store %arg5[%c0_6, %c0_7, %c0_8], %32 {strides = array<i32>} : memref<3x8x256xf32, #tpu.memory_space<vmem>>, vector<3x8x256xf32>,
    return
  }
  func.func @transform_0(%arg0: i32, %arg1: i32) -> (i32, i32, i32) {
    %c0_i32 = arith.constant 0 : i32
    %c0_i32_0 = arith.constant 0 : i32
    return %arg0, %c0_i32, %arg1 : i32, i32, i32
  }
  func.func @transform_1(%arg0: i32, %arg1: i32) -> (i32, i32) {
    %c0_i32 = arith.constant 0 : i32
    %c0_i32_0 = arith.constant 0 : i32
    %c0_i32_1 = arith.constant 0 : i32
    return %c0_i32, %c0_i32_0 : i32, i32
  }
  func.func @transform_2(%arg0: i32, %arg1: i32) -> (i32, i32) {
    %c0_i32 = arith.constant 0 : i32
    %c0_i32_0 = arith.constant 0 : i32
    %c0_i32_1 = arith.constant 0 : i32
    return %c0_i32, %c0_i32_0 : i32, i32
  }
  func.func @transform_3(%arg0: i32, %arg1: i32) -> (i32, i32, i32) {
    %c0_i32 = arith.constant 0 : i32
    %c0_i32_0 = arith.constant 0 : i32
    return %arg0, %c0_i32, %arg1 : i32, i32, i32
  }
}

</mosaic_0001>

<llo_original>
// kernel: _apply_all.1
$region0: #{_apply_all.1}
  #allocation0 [shape = 'u32[]', space=smem, size = 0x4, offset = 0x4, fixed_abs, tag = 'smem constant byte address 0x4 - core index']
  #allocation1 [shape = 'u32[144,128]{1,0:T(1,128)}', space=vmem, size = 0x12000, scoped, tag = 'internal scratch']
  %s0 = inlined_call_operand.vmem [shape: f32[6,4,256], index: 0, kind: input, shape index: {}]
  %s1 = inlined_call_operand.vmem [shape: f32[8,4], index: 1, kind: input, shape index: {}]
  %s2 = inlined_call_operand.vmem [shape: f32[8,1], index: 2, kind: input, shape index: {}]
  %s3 = inlined_call_operand.vmem [shape: f32[6,8,256], index: 3, kind: output, shape index: {}]
  %s4 = sld [smem:[#allocation0]]
  $region45: #{_apply_all.1} parent=0
    _
  %s6 = ssub.s32 1, %s4
  %s7 = scalar_select 0, %s6, %s4
  loop: start=0, step=1, limit=4
  $region2: #{_apply_all.1} parent=0 // loop_pre_header
    _
  $region3: #{_apply_all.1} parent=0 // loop_header
    %s9 = sphi 0, %s13
    %p10 = scmp.ge.s32.totalorder %s9, 4
    %s16 = sphi 0, %s28
    %s17 = sphi 0, %s24
    %s18 = sphi 0, %s16
    %s19 = sphi 0, %s17
    %s20 = sphi 0, %s18
    %s21 = sphi 0, %s19
    %s33 = sphi 0, %s35
    %s36 = sphi 0, %s33
    %s37 = sphi 0, %s36
    %s53 = sphi 0, %s37
    %s57 = sphi 0, %s57
    %s59 = sphi 0, %s57
    %s60 = sphi 0, %s59
    %s74 = sphi 0, %s60
    %s78 = sphi 0, %s78
    %s80 = sphi 0, %s78
    %s81 = sphi 0, %s80
    %s95 = sphi 0, %s81
    %s103 = sphi 0, %s105
    %s106 = sphi 0, %s103
    %s107 = sphi 0, %s106
    %s123 = sphi 0, %s107
  $region4: #{_apply_all.1} parent=0 // loop_header_branch
    %12 = sbr.rel (%p10) target = $region8
  $region5: #{_apply_all.1} parent=0 // loop_body
    %s14 = ssub.s32 %s9, 1
    %s15 = ssub.s32 %s9, 2
    %s22 = sadd.s32 1, %s17
    %p23 = scmp.ge.s32.totalorder %s22, 1
    %s24 = scalar_select %p23, 0, %s22
    %s25 = sadd.s32 1, %s16
    %s26 = scalar_select %p23, %s25, %s16
    %p27 = scmp.ge.s32.totalorder %s26, 2
    %s28 = scalar_select %p27, 0, %s26
    %s29 = ssub.s32 %s16, %s28
    %s30 = ssub.s32 %s17, %s24
    %s31 = sor.u32 %s29, %s30
    %p32 = scmp.eq.s32.totalorder %s31, 0
    %s34 = sadd.s32 %s33, 1
    %s35 = scalar_select %p32, %s33, %s34
    %p38 = pneg %p32
    %p39 = scmp.eq.s32.totalorder %s9, 1
    %p40 = por %p38, %p39
    %p41 = scmp.ne.s32.totalorder %s33, %s36
    %p42 = scmp.eq.s32.totalorder %s9, 0
    %p43 = por %p41, %p42
    %p44 = scmp.ne.s32.totalorder %s33, %s36
    %p45 = scmp.eq.s32.totalorder %s14, 1
    %p46 = por %p44, %p45
    %p47 = scmp.ne.s32.totalorder %s36, %s37
    %p48 = scmp.eq.s32.totalorder %s14, 0
    %p49 = por %p47, %p48
    %p50 = scmp.ne.s32.totalorder %s36, %s37
    %p51 = scmp.eq.s32.totalorder %s15, 1
    %p52 = por %p50, %p51
    %p54 = scmp.ne.s32.totalorder %s37, %s53
    %p55 = scmp.eq.s32.totalorder %s15, 0
    %p56 = por %p54, %p55
    %s58 = sadd.s32 %s57, 1
    %p61 = scmp.eq.s32.totalorder %s9, 1
    %p62 = scmp.ne.s32.totalorder %s57, %s59
    %p63 = scmp.eq.s32.totalorder %s9, 0
    %p64 = por %p62, %p63
    %p65 = scmp.ne.s32.totalorder %s57, %s59
    %p66 = scmp.eq.s32.totalorder %s14, 1
    %p67 = por %p65, %p66
    %p68 = scmp.ne.s32.totalorder %s59, %s60
    %p69 = scmp.eq.s32.totalorder %s14, 0
    %p70 = por %p68, %p69
    %p71 = scmp.ne.s32.totalorder %s59, %s60
    %p72 = scmp.eq.s32.totalorder %s15, 1
    %p73 = por %p71, %p72
    %p75 = scmp.ne.s32.totalorder %s60, %s74
    %p76 = scmp.eq.s32.totalorder %s15, 0
    %p77 = por %p75, %p76
    %s79 = sadd.s32 %s78, 1
    %p82 = scmp.eq.s32.totalorder %s9, 1
    %p83 = scmp.ne.s32.totalorder %s78, %s80
    %p84 = scmp.eq.s32.totalorder %s9, 0
    %p85 = por %p83, %p84
    %p86 = scmp.ne.s32.totalorder %s78, %s80
    %p87 = scmp.eq.s32.totalorder %s14, 1
    %p88 = por %p86, %p87
    %p89 = scmp.ne.s32.totalorder %s80, %s81
    %p90 = scmp.eq.s32.totalorder %s14, 0
    %p91 = por %p89, %p90
    %p92 = scmp.ne.s32.totalorder %s80, %s81
    %p93 = scmp.eq.s32.totalorder %s15, 1
    %p94 = por %p92, %p93
    %p96 = scmp.ne.s32.totalorder %s81, %s95
    %p97 = scmp.eq.s32.totalorder %s15, 0
    %p98 = por %p96, %p97
    %s99 = ssub.s32 %s16, %s28
    %s100 = ssub.s32 %s17, %s24
    %s101 = sor.u32 %s99, %s100
    %p102 = scmp.eq.s32.totalorder %s101, 0
    %s104 = sadd.s32 %s103, 1
    %s105 = scalar_select %p102, %s103, %s104
    %p108 = pneg %p102
    %p109 = scmp.eq.s32.totalorder %s9, 1
    %p110 = por %p108, %p109
    %p111 = scmp.ne.s32.totalorder %s103, %s106
    %p112 = scmp.eq.s32.totalorder %s9, 0
    %p113 = por %p111, %p112
    %p114 = scmp.ne.s32.totalorder %s103, %s106
    %p115 = scmp.eq.s32.totalorder %s14, 1
    %p116 = por %p114, %p115
    %p117 = scmp.ne.s32.totalorder %s106, %s107
    %p118 = scmp.eq.s32.totalorder %s14, 0
    %p119 = por %p117, %p118
    %p120 = scmp.ne.s32.totalorder %s106, %s107
    %p121 = scmp.eq.s32.totalorder %s15, 1
    %p122 = por %p120, %p121
    %p124 = scmp.ne.s32.totalorder %s107, %s123
    %p125 = scmp.eq.s32.totalorder %s15, 0
    %p126 = por %p124, %p125
    %p127 = scmp.le.s32.totalorder 1, %s9
    %p128 = scmp.lt.s32.totalorder %s9, 3
    %p129 = pnand %p127, %p128
    %p130 = pneg %p129
    // Predicated region
    $region9: #{_apply_all.1} parent=5 // pred_check
      _
    $region10: #{_apply_all.1} parent=5 // pred_check_branch
      %132 = sbr.rel (%p129) target = $region12
    $region11: #{_apply_all.1} parent=5 // pred_region
      %s133 = ssub.s32 %s9, 1
      // Predicated region
      $region13: #{_apply_all.1} parent=11 // pred_check
        %p134 = pneg %p70
      $region14: #{_apply_all.1} parent=11 // pred_check_branch
        %136 = sbr.rel (%p134) target = $region16
      $region15: #{_apply_all.1} parent=11 // pred_region
        _
      $region16: #{_apply_all.1} parent=11 // pred_fallthru
        _
      // Predicated region
      $region17: #{_apply_all.1} parent=11 // pred_check
        %p137 = pneg %p91
      $region18: #{_apply_all.1} parent=11 // pred_check_branch
        %139 = sbr.rel (%p137) target = $region20
      $region19: #{_apply_all.1} parent=11 // pred_region
        _
      $region20: #{_apply_all.1} parent=11 // pred_fallthru
        _
    $region12: #{_apply_all.1} parent=5 // pred_fallthru
      _
    %p140 = scmp.lt.s32.totalorder %s9, 2
    // Predicated region
    $region21: #{_apply_all.1} parent=5 // pred_check
      %p141 = pneg %p140
    $region22: #{_apply_all.1} parent=5 // pred_check_branch
      %143 = sbr.rel (%p141) target = $region24
    $region23: #{_apply_all.1} parent=5 // pred_region
      // Predicated region
      $region25: #{_apply_all.1} parent=23 // pred_check
        %p144 = pneg %p43
      $region26: #{_apply_all.1} parent=23 // pred_check_branch
        %146 = sbr.rel (%p144) target = $region28
      $region27: #{_apply_all.1} parent=23 // pred_region
        %s147 = smul.u32 3, %s16
        %s148 = smul.u32 2, %s17
        %p149 = scmp.lt.s32.totalorder %s147, 5
        %s150 = scalar_select %p149, %s147, 5
        %p151 = scmp.lt.s32.totalorder %s148, 1
        %s152 = scalar_select %p151, %s148, 1
        %s153 = smul.addr %s150, 2
        %s154 = sadd.s32 %s152, %s153
        %s155 = smul.addr %s154, 4
        %s156 = scalar_lea.vmem %s0, %s155
        %s157 = smul.u32 3, %s16
        %s158 = smul.u32 2, %s17
      $region28: #{_apply_all.1} parent=23 // pred_fallthru
        _
    $region24: #{_apply_all.1} parent=5 // pred_fallthru
      _
    %p159 = scmp.le.s32.totalorder 1, %s9
    %p160 = scmp.lt.s32.totalorder %s9, 3
    %p161 = pnand %p159, %p160
    %p162 = pneg %p161
    // Predicated region
    $region29: #{_apply_all.1} parent=5 // pred_check
      _
    $region30: #{_apply_all.1} parent=5 // pred_check_branch
      %164 = sbr.rel (%p161) target = $region32
    $region31: #{_apply_all.1} parent=5 // pred_region
      %s165 = ssub.s32 %s9, 1
      %s166 = smul.u32 3, %s18
      %s167 = smul.u32 2, %s19
      %p168 = scmp.lt.s32.totalorder %s166, 5
      %s169 = scalar_select %p168, %s166, 5
      %p170 = scmp.lt.s32.totalorder %s167, 1
      %s171 = scalar_select %p170, %s167, 1
      %s172 = smul.addr %s169, 2
      %s173 = sadd.s32 %s171, %s172
      %s174 = smul.addr %s173, 4
      %s175 = scalar_lea.vmem %s0, %s174
      %p176 = pneg %p49
      %p177 = pneg %p46
      %p178 = pneg %p70
      %p179 = pneg %p67
      %p180 = pneg %p91
      %p181 = pneg %p88
      %p182 = pneg %p119
      %p183 = pneg %p116
      %s184 = smul.u32 3, %s18
      %s185 = smul.u32 2, %s19
      %p186 = scmp.lt.s32.totalorder %s184, 5
      %s187 = scalar_select %p186, %s184, 5
      %p188 = scmp.lt.s32.totalorder %s185, 1
      %s189 = scalar_select %p188, %s185, 1
      %s190 = smul.addr %s187, 2
      %s191 = sadd.s32 %s189, %s190
      %s192 = smul.addr %s191, 8
      %s193 = scalar_lea.vmem %s3, %s192
      %s194 = smul.u32 3, %s18
      %s195 = smul.u32 2, %s19
      %p196 = scmp.lt.s32.totalorder %s194, 5
      %s197 = scalar_select %p196, %s194, 5
      %p198 = scmp.lt.s32.totalorder %s195, 1
      %s199 = scalar_select %p198, %s195, 1
      %s200 = smul.addr %s197, 2
      %s201 = sadd.s32 %s199, %s200
      %s202 = smul.addr %s201, 4
      %s203 = scalar_lea.vmem %s0, %s202
      %s204 = smul.u32 3, %s18
      %s205 = smul.u32 2, %s19
      %s206 = smul.u32 3, %s18
      %s207 = smul.u32 2, %s19
      %p208 = scmp.lt.s32.totalorder %s206, 5
      %s209 = scalar_select %p208, %s206, 5
      %p210 = scmp.lt.s32.totalorder %s207, 1
      %s211 = scalar_select %p210, %s207, 1
      %s212 = smul.addr %s209, 2
      %s213 = sadd.s32 %s211, %s212
      %s214 = smul.addr %s213, 8
      %s215 = scalar_lea.vmem %s3, %s214
      %s216 = smul.u32 3, %s18
      %s217 = smul.u32 2, %s19
      %v218 = vld [vmem:[%s203] sm:$0xff]
      %v219 = vld [vmem:[%s203 + $0x8] sm:$0xff]
      %v220 = vld [vmem:[%s203 + $0x10] sm:$0xff]
      %v221 = vld [vmem:[%s1] sm:$0xff]
      %223 = vset.pattern.permute.xlu0 0
      %224 = vperm.xlu0 %223, %v221
      %v225 = vpop.permute.xlu0 %224
      %v230 = vlaneseq
      %v231 = vshrl.u32 %v230, 7
      %v232 = vsub.s32 0, %v231
      %v233 = vrot.slane %v218, %v232
      %v234 = vlaneseq
      %v235 = vshrl.u32 %v234, 7
      %v236 = vsub.s32 4, %v235
      %v237 = vrot.slane %v218, %v236
      %v238 = vlaneseq
      %v239 = vshrl.u32 %v238, 7
      %v240 = vsub.s32 0, %v239
      %v241 = vrot.slane %v219, %v240
      %v242 = vlaneseq
      %v243 = vshrl.u32 %v242, 7
      %v244 = vsub.s32 4, %v243
      %v245 = vrot.slane %v219, %v244
      %v246 = vlaneseq
      %v247 = vshrl.u32 %v246, 7
      %v248 = vsub.s32 0, %v247
      %v249 = vrot.slane %v220, %v248
      %v250 = vlaneseq
      %v251 = vshrl.u32 %v250, 7
      %v252 = vsub.s32 4, %v251
      %v253 = vrot.slane %v220, %v252
      %v260 = vlaneseq
      %v261 = vshrl.u32 %v260, 7
      %v262 = vsub.s32 0, %v261
      %v263 = vrot.slane %v233, %v262
      %v264 = vlaneseq
      %v265 = vshrl.u32 %v264, 7
      %v266 = vsub.s32 0, %v265
      %v267 = vrot.slane %v237, %v266
      %v268 = vlaneseq
      %v269 = vshrl.u32 %v268, 7
      %v270 = vsub.s32 0, %v269
      %v271 = vrot.slane %v241, %v270
      %v272 = vlaneseq
      %v273 = vshrl.u32 %v272, 7
      %v274 = vsub.s32 0, %v273
      %v275 = vrot.slane %v245, %v274
      %v276 = vlaneseq
      %v277 = vshrl.u32 %v276, 7
      %v278 = vsub.s32 0, %v277
      %v279 = vrot.slane %v249, %v278
      %v280 = vlaneseq
      %v281 = vshrl.u32 %v280, 7
      %v282 = vsub.s32 0, %v281
      %v283 = vrot.slane %v253, %v282
      %v284 = vmul.f32 %v225, %v263
      %v285 = vmul.f32 %v225, %v267
      %v286 = vmul.f32 %v225, %v271
      %v287 = vmul.f32 %v225, %v275
      %v288 = vmul.f32 %v225, %v279
      %v289 = vmul.f32 %v225, %v283
      %290 = vset.pattern.permute.xlu0 1
      %291 = vperm.xlu0 %290, %v221
      %v292 = vpop.permute.xlu0 %291
      %v294 = vlaneseq
      %v295 = vshrl.u32 %v294, 7
      %v296 = vsub.s32 1, %v295
      %v297 = vrot.slane %v218, %v296
      %v298 = vlaneseq
      %v299 = vshrl.u32 %v298, 7
      %v300 = vsub.s32 5, %v299
      %v301 = vrot.slane %v218, %v300
      %v302 = vlaneseq
      %v303 = vshrl.u32 %v302, 7
      %v304 = vsub.s32 1, %v303
      %v305 = vrot.slane %v219, %v304
      %v306 = vlaneseq
      %v307 = vshrl.u32 %v306, 7
      %v308 = vsub.s32 5, %v307
      %v309 = vrot.slane %v219, %v308
      %v310 = vlaneseq
      %v311 = vshrl.u32 %v310, 7
      %v312 = vsub.s32 1, %v311
      %v313 = vrot.slane %v220, %v312
      %v314 = vlaneseq
      %v315 = vshrl.u32 %v314, 7
      %v316 = vsub.s32 5, %v315
      %v317 = vrot.slane %v220, %v316
      %v324 = vlaneseq
      %v325 = vshrl.u32 %v324, 7
      %v326 = vsub.s32 1, %v325
      %v327 = vrot.slane %v297, %v326
      %v328 = vlaneseq
      %v329 = vshrl.u32 %v328, 7
      %v330 = vsub.s32 1, %v329
      %v331 = vrot.slane %v301, %v330
      %v332 = vlaneseq
      %v333 = vshrl.u32 %v332, 7
      %v334 = vsub.s32 1, %v333
      %v335 = vrot.slane %v305, %v334
      %v336 = vlaneseq
      %v337 = vshrl.u32 %v336, 7
      %v338 = vsub.s32 1, %v337
      %v339 = vrot.slane %v309, %v338
      %v340 = vlaneseq
      %v341 = vshrl.u32 %v340, 7
      %v342 = vsub.s32 1, %v341
      %v343 = vrot.slane %v313, %v342
      %v344 = vlaneseq
      %v345 = vshrl.u32 %v344, 7
      %v346 = vsub.s32 1, %v345
      %v347 = vrot.slane %v317, %v346
      %v348 = vmul.f32 %v292, %v327
      %v349 = vmul.f32 %v292, %v331
      %v350 = vmul.f32 %v292, %v335
      %v351 = vmul.f32 %v292, %v339
      %v352 = vmul.f32 %v292, %v343
      %v353 = vmul.f32 %v292, %v347
      %v354 = vadd.f32 %v284, %v348
      %v355 = vadd.f32 %v285, %v349
      %v356 = vadd.f32 %v286, %v350
      %v357 = vadd.f32 %v287, %v351
      %v358 = vadd.f32 %v288, %v352
      %v359 = vadd.f32 %v289, %v353
      %360 = vset.pattern.permute.xlu0 2
      %361 = vperm.xlu0 %360, %v221
      %v362 = vpop.permute.xlu0 %361
      %v364 = vlaneseq
      %v365 = vshrl.u32 %v364, 7
      %v366 = vsub.s32 2, %v365
      %v367 = vrot.slane %v218, %v366
      %v368 = vlaneseq
      %v369 = vshrl.u32 %v368, 7
      %v370 = vsub.s32 6, %v369
      %v371 = vrot.slane %v218, %v370
      %v372 = vlaneseq
      %v373 = vshrl.u32 %v372, 7
      %v374 = vsub.s32 2, %v373
      %v375 = vrot.slane %v219, %v374
      %v376 = vlaneseq
      %v377 = vshrl.u32 %v376, 7
      %v378 = vsub.s32 6, %v377
      %v379 = vrot.slane %v219, %v378
      %v380 = vlaneseq
      %v381 = vshrl.u32 %v380, 7
      %v382 = vsub.s32 2, %v381
      %v383 = vrot.slane %v220, %v382
      %v384 = vlaneseq
      %v385 = vshrl.u32 %v384, 7
      %v386 = vsub.s32 6, %v385
      %v387 = vrot.slane %v220, %v386
      %v394 = vlaneseq
      %v395 = vshrl.u32 %v394, 7
      %v396 = vsub.s32 2, %v395
      %v397 = vrot.slane %v367, %v396
      %v398 = vlaneseq
      %v399 = vshrl.u32 %v398, 7
      %v400 = vsub.s32 2, %v399
      %v401 = vrot.slane %v371, %v400
      %v402 = vlaneseq
      %v403 = vshrl.u32 %v402, 7
      %v404 = vsub.s32 2, %v403
      %v405 = vrot.slane %v375, %v404
      %v406 = vlaneseq
      %v407 = vshrl.u32 %v406, 7
      %v408 = vsub.s32 2, %v407
      %v409 = vrot.slane %v379, %v408
      %v410 = vlaneseq
      %v411 = vshrl.u32 %v410, 7
      %v412 = vsub.s32 2, %v411
      %v413 = vrot.slane %v383, %v412
      %v414 = vlaneseq
      %v415 = vshrl.u32 %v414, 7
      %v416 = vsub.s32 2, %v415
      %v417 = vrot.slane %v387, %v416
      %v418 = vmul.f32 %v362, %v397
      %v419 = vmul.f32 %v362, %v401
      %v420 = vmul.f32 %v362, %v405
      %v421 = vmul.f32 %v362, %v409
      %v422 = vmul.f32 %v362, %v413
      %v423 = vmul.f32 %v362, %v417
      %v424 = vadd.f32 %v354, %v418
      %v425 = vadd.f32 %v355, %v419
      %v426 = vadd.f32 %v356, %v420
      %v427 = vadd.f32 %v357, %v421
      %v428 = vadd.f32 %v358, %v422
      %v429 = vadd.f32 %v359, %v423
      %430 = vset.pattern.permute.xlu0 3
      %431 = vperm.xlu0 %430, %v221
      %v432 = vpop.permute.xlu0 %431
      %v434 = vlaneseq
      %v435 = vshrl.u32 %v434, 7
      %v436 = vsub.s32 3, %v435
      %v437 = vrot.slane %v218, %v436
      %v438 = vlaneseq
      %v439 = vshrl.u32 %v438, 7
      %v440 = vsub.s32 7, %v439
      %v441 = vrot.slane %v218, %v440
      %v442 = vlaneseq
      %v443 = vshrl.u32 %v442, 7
      %v444 = vsub.s32 3, %v443
      %v445 = vrot.slane %v219, %v444
      %v446 = vlaneseq
      %v447 = vshrl.u32 %v446, 7
      %v448 = vsub.s32 7, %v447
      %v449 = vrot.slane %v219, %v448
      %v450 = vlaneseq
      %v451 = vshrl.u32 %v450, 7
      %v452 = vsub.s32 3, %v451
      %v453 = vrot.slane %v220, %v452
      %v454 = vlaneseq
      %v455 = vshrl.u32 %v454, 7
      %v456 = vsub.s32 7, %v455
      %v457 = vrot.slane %v220, %v456
      %v464 = vlaneseq
      %v465 = vshrl.u32 %v464, 7
      %v466 = vsub.s32 3, %v465
      %v467 = vrot.slane %v437, %v466
      %v468 = vlaneseq
      %v469 = vshrl.u32 %v468, 7
      %v470 = vsub.s32 3, %v469
      %v471 = vrot.slane %v441, %v470
      %v472 = vlaneseq
      %v473 = vshrl.u32 %v472, 7
      %v474 = vsub.s32 3, %v473
      %v475 = vrot.slane %v445, %v474
      %v476 = vlaneseq
      %v477 = vshrl.u32 %v476, 7
      %v478 = vsub.s32 3, %v477
      %v479 = vrot.slane %v449, %v478
      %v480 = vlaneseq
      %v481 = vshrl.u32 %v480, 7
      %v482 = vsub.s32 3, %v481
      %v483 = vrot.slane %v453, %v482
      %v484 = vlaneseq
      %v485 = vshrl.u32 %v484, 7
      %v486 = vsub.s32 3, %v485
      %v487 = vrot.slane %v457, %v486
      %v488 = vmul.f32 %v432, %v467
      %v489 = vmul.f32 %v432, %v471
      %v490 = vmul.f32 %v432, %v475
      %v491 = vmul.f32 %v432, %v479
      %v492 = vmul.f32 %v432, %v483
      %v493 = vmul.f32 %v432, %v487
      %v494 = vadd.f32 %v424, %v488
      %v495 = vadd.f32 %v425, %v489
      %v496 = vadd.f32 %v426, %v490
      %v497 = vadd.f32 %v427, %v491
      %v498 = vadd.f32 %v428, %v492
      %v499 = vadd.f32 %v429, %v493
      %v500 = vld [vmem:[%s2] sm:$0xff]
      %502 = vset.pattern.permute.xlu0 0
      %503 = vperm.xlu0 %502, %v500
      %v504 = vpop.permute.xlu0 %503
      %v506 = vadd.f32 %v494, %v504
      %v507 = vadd.f32 %v495, %v504
      %v508 = vadd.f32 %v496, %v504
      %v509 = vadd.f32 %v497, %v504
      %v510 = vadd.f32 %v498, %v504
      %v511 = vadd.f32 %v499, %v504
      %512 = vst [vmem:[%s215] sm:$0xff] %v506
      %513 = vst [vmem:[%s215 + $0x8] sm:$0xff] %v507
      %514 = vst [vmem:[%s215 + $0x10] sm:$0xff] %v508
      %515 = vst [vmem:[%s215 + $0x18] sm:$0xff] %v509
      %516 = vst [vmem:[%s215 + $0x20] sm:$0xff] %v510
      %517 = vst [vmem:[%s215 + $0x28] sm:$0xff] %v511
      %s518 = smul.u32 3, %s18
      %s519 = smul.u32 2, %s19
      %p520 = scmp.lt.s32.totalorder %s518, 5
      %s521 = scalar_select %p520, %s518, 5
      %p522 = scmp.lt.s32.totalorder %s519, 1
      %s523 = scalar_select %p522, %s519, 1
      %s524 = smul.addr %s521, 2
      %s525 = sadd.s32 %s523, %s524
      %s526 = smul.addr %s525, 8
      %s527 = scalar_lea.vmem %s3, %s526
      // Predicated region
      $region33: #{_apply_all.1} parent=31 // pred_check
        %p528 = pneg %p116
      $region34: #{_apply_all.1} parent=31 // pred_check_branch
        %530 = sbr.rel (%p528) target = $region36
      $region35: #{_apply_all.1} parent=31 // pred_region
        %s531 = smul.u32 3, %s18
        %s532 = smul.u32 2, %s19
      $region36: #{_apply_all.1} parent=31 // pred_fallthru
        _
    $region32: #{_apply_all.1} parent=5 // pred_fallthru
      _
    %p533 = scmp.le.s32.totalorder 2, %s9
    // Predicated region
    $region37: #{_apply_all.1} parent=5 // pred_check
      %p534 = pneg %p533
    $region38: #{_apply_all.1} parent=5 // pred_check_branch
      %536 = sbr.rel (%p534) target = $region40
    $region39: #{_apply_all.1} parent=5 // pred_region
      %s537 = ssub.s32 %s9, 2
      // Predicated region
      $region41: #{_apply_all.1} parent=39 // pred_check
        %p538 = pneg %p122
      $region42: #{_apply_all.1} parent=39 // pred_check_branch
        %540 = sbr.rel (%p538) target = $region44
      $region43: #{_apply_all.1} parent=39 // pred_region
        %s541 = smul.u32 3, %s20
        %s542 = smul.u32 2, %s21
        %p543 = scmp.lt.s32.totalorder %s541, 5
        %s544 = scalar_select %p543, %s541, 5
        %p545 = scmp.lt.s32.totalorder %s542, 1
        %s546 = scalar_select %p545, %s542, 1
        %s547 = smul.addr %s544, 2
        %s548 = sadd.s32 %s546, %s547
        %s549 = smul.addr %s548, 8
        %s550 = scalar_lea.vmem %s3, %s549
      $region44: #{_apply_all.1} parent=39 // pred_fallthru
        _
    $region40: #{_apply_all.1} parent=5 // pred_fallthru
      _
  $region6: #{_apply_all.1} parent=0 // loop_footer
    %s13 = sadd.s32 1, %s9
  $region7: #{_apply_all.1} parent=0 // loop_footer_branch
    %8 = sbr.rel target = $region3
  $region8: #{_apply_all.1} parent=0 // loop_exit
    _

</llo_original>
